<compile_context>
chip_gen: v7x
topology: tpu7x:2x2x1
jax: 0.10.0
libtpu: 0.0.40
codegen_flags: <defaults>
</compile_context>

<pallas_src>
import functools

import jax
import jax.numpy as jnp
from jax.experimental import pallas as pl
from jax.experimental.pallas import tpu as pltpu


def ssdp_kernel(params_ref, pre_ref, spost_ref, dt_ref, out_ref,
                *, batch_tile, true_batch):
    b = pl.program_id(2)                 # trailing (reduction) axis = batch tiles
    nb = pl.num_programs(2)

    a_baseline = params_ref[0]           # A_baseline
    neg_inv_2sig2 = params_ref[1]        # -1 / (2 * sigma^2)
    inv_batch = params_ref[2]            # 1 / true B

    @pl.when(b == 0)
    def _init():
        out_ref[...] = jnp.zeros_like(out_ref)

    pre = pre_ref[...].astype(jnp.float32)      # (Bt, ci_t)
    spost = spost_ref[...].astype(jnp.float32)  # (Bt, co_t), pre-scaled by (A_plus+A_base)
    dt = dt_ref[...]                            # (Bt, co_t, ci_t), native dtype

    # Square in native dtype (bf16 VPU on v6e/v7x), upcast only for exp/acc.
    dt2 = (dt * dt).astype(jnp.float32)
    gauss = jnp.exp(neg_inv_2sig2 * dt2)

    # A_plus*sync*gauss - A_baseline*(1-sync)*gauss
    #   == gauss * ((A_plus + A_baseline) * sync - A_baseline),
    # with (A_plus + A_baseline) already folded into spost by the wrapper.
    sync_scaled = spost[:, :, None] * pre[:, None, :]       # (Bt, co_t, ci_t)
    dw = gauss * (sync_scaled - a_baseline)

    ragged = (true_batch % batch_tile) != 0                 # Python-static
    if ragged:
        last = nb - 1

        @pl.when(b == last)
        def _acc_tail():
            rows = jax.lax.broadcasted_iota(jnp.int32, (batch_tile, 1, 1), 0)
            valid = (b * batch_tile + rows) < true_batch
            out_ref[...] += jnp.sum(jnp.where(valid, dw, 0.0), axis=0)

        @pl.when(b != last)
        def _acc_full():
            out_ref[...] += jnp.sum(dw, axis=0)
    else:
        out_ref[...] += jnp.sum(dw, axis=0)

    @pl.when(b == nb - 1)
    def _finalize():
        out_ref[...] = jnp.clip(out_ref[...] * inv_batch, -1.0, 1.0)


def ssdp_forward(pre_spike, post_spike, delta_t,
                 a_plus=0.00015, a_minus=0.0001, a_baseline=5e-05, sigma=1.0,
                 *, batch_tile=None, cout_blocks=None, cin_blocks=None,
                 vmem_tile_budget_bytes=8 * 1024 * 1024):
    B, C_in = pre_spike.shape
    B2, C_out = post_spike.shape
    assert B2 == B and delta_t.shape == (B, C_out, C_in)
    del a_minus  # present as a module parameter; unused in the forward pass.

    elem_bytes = jnp.dtype(delta_t.dtype).itemsize

    # --- C_out split onto leading "parallel" axis (helps v7x 2-TC; free elsewhere) ---
    if cout_blocks is None:
        cout_blocks = 2 if (C_out % 256 == 0) else 1
    assert C_out % cout_blocks == 0
    co_t = C_out // cout_blocks
    if cout_blocks > 1:
        # co_t is the lane dim of the 2-D post block -> keep it 128-dense.
        assert co_t % 128 == 0, "per-block C_out must be a multiple of 128 when split"

    # --- C_in split for large layers: keep the delta_t slab within budget ---
    if cin_blocks is None:
        cin_blocks = 1
        while True:
            ci_t = C_in // cin_blocks
            if co_t * ci_t * 8 * elem_bytes <= vmem_tile_budget_bytes:
                break
            nxt = cin_blocks * 2
            if C_in % nxt != 0 or (C_in // nxt) % 128 != 0:
                break
            cin_blocks = nxt
    assert C_in % cin_blocks == 0
    ci_t = C_in // cin_blocks
    if cin_blocks > 1:
        assert ci_t % 128 == 0, "per-block C_in must be a multiple of 128 when split"

    # --- batch tile: biggest slab under budget, sublane-aligned (x8) or == B ---
    if batch_tile is None:
        per_sample = max(co_t * ci_t * elem_bytes, 1)
        batch_tile = max(1, vmem_tile_budget_bytes // per_sample)
    batch_tile = int(min(batch_tile, B))
    if batch_tile < B:
        batch_tile = max(8, (batch_tile // 8) * 8)
        batch_tile = min(batch_tile, B)
    n_b = pl.cdiv(B, batch_tile)

    # Fold (A_plus + A_baseline) into post (tiny B*C_out multiply, saves one
    # full-size VPU multiply per delta_t element in the kernel).
    spost = post_spike.astype(jnp.float32) * (a_plus + a_baseline)

    # Hoisted scalar parameters (runtime values via scalar prefetch -> SMEM).
    params = jnp.array(
        [a_baseline, -1.0 / (2.0 * sigma * sigma), 1.0 / B], dtype=jnp.float32)

    kernel = functools.partial(ssdp_kernel, batch_tile=batch_tile, true_batch=B)

    grid_spec = pltpu.PrefetchScalarGridSpec(
        num_scalar_prefetch=1,
        grid=(cout_blocks, cin_blocks, n_b),
        in_specs=[
            pl.BlockSpec((batch_tile, ci_t), lambda co, ci, b, p: (b, ci)),        # pre
            pl.BlockSpec((batch_tile, co_t), lambda co, ci, b, p: (b, co)),        # scaled post
            pl.BlockSpec((batch_tile, co_t, ci_t), lambda co, ci, b, p: (b, co, ci)),  # delta_t
        ],
        out_specs=pl.BlockSpec((co_t, ci_t), lambda co, ci, b, p: (co, ci)),
    )

    # Explicit VMEM budget: 2x double-buffered inputs + resident output (+slack),
    # capped at 48 MiB to keep headroom under v7x's 64 MiB physical VMEM.
    pre_bytes = jnp.dtype(pre_spike.dtype).itemsize
    dt_tile_b = batch_tile * co_t * ci_t * elem_bytes
    pre_tile_b = batch_tile * max(ci_t, 128) * pre_bytes
    spost_tile_b = batch_tile * max(co_t, 128) * 4
    out_tile_b = max(co_t, 8) * max(ci_t, 128) * 4
    needed = 2 * (dt_tile_b + pre_tile_b + spost_tile_b) + out_tile_b + (1 << 20)
    vmem_limit = int(min(48 << 20, max(needed, 16 << 20)))

    n_elem = B * C_out * C_in
    cost = pl.CostEstimate(
        flops=6 * n_elem,
        transcendentals=n_elem,
        bytes_accessed=n_elem * elem_bytes
        + (B * C_in + B * C_out + C_out * C_in) * 4,
    )

    return pl.pallas_call(
        kernel,
        out_shape=jax.ShapeDtypeStruct((C_out, C_in), jnp.float32),
        grid_spec=grid_spec,
        compiler_params=pltpu.CompilerParams(
            dimension_semantics=("parallel", "parallel", "arbitrary"),
            vmem_limit_bytes=vmem_limit),
        cost_estimate=cost,
    )(params, pre_spike, spost, delta_t)


def ssdp_reference(pre_spike, post_spike, delta_t,
                   a_plus=0.00015, a_minus=0.0001, a_baseline=5e-05, sigma=1.0):
    post_e = post_spike[:, :, None]
    pre_e = pre_spike[:, None, :]
    sync = post_e * pre_e
    gauss = jnp.exp(-delta_t ** 2 / (2.0 * sigma ** 2))
    dw = (a_plus * sync * gauss - a_baseline * (1.0 - sync) * gauss).mean(axis=0)
    return jnp.clip(dw, -1.0, 1.0)


if __name__ == "__main__":
    a_plus, a_minus, a_baseline, sigma = 0.00015, 0.0001, 5e-05, 1.0

    # 1) Small shapes (module demo sizes): batch=8, C_in=32, C_out=16.
    #    Whole batch fits one grid step.
    B, C_in, C_out = 8, 32, 16
    k1, k2, k3 = jax.random.split(jax.random.PRNGKey(0), 3)
    pre = (jax.random.uniform(k1, (B, C_in)) > 0.5).astype(jnp.float32)
    post = (jax.random.uniform(k2, (B, C_out)) > 0.5).astype(jnp.float32)
    dt = jax.random.normal(k3, (B, C_out, C_in), dtype=jnp.float32)

    ref = ssdp_reference(pre, post, dt, a_plus, a_minus, a_baseline, sigma)
    out = ssdp_forward(pre, post, dt, a_plus, a_minus, a_baseline, sigma)
    jax.block_until_ready(out)
    assert out.shape == (C_out, C_in)
    assert jnp.allclose(out, ref, atol=1e-6, rtol=1e-5)

    # 2) Ragged batch tiling (B=20, batch_tile=8 -> partial last tile, masked
    #    in-kernel, no host-side padding of delta_t).
    B2 = 20
    k4, k5, k6 = jax.random.split(jax.random.PRNGKey(1), 3)
    pre2 = (jax.random.uniform(k4, (B2, C_in)) > 0.5).astype(jnp.float32)
    post2 = (jax.random.uniform(k5, (B2, C_out)) > 0.5).astype(jnp.float32)
    dt2 = jax.random.normal(k6, (B2, C_out, C_in), dtype=jnp.float32)

    ref2 = ssdp_reference(pre2, post2, dt2, a_plus, a_minus, a_baseline, sigma)
    out2 = ssdp_forward(pre2, post2, dt2, a_plus, a_minus, a_baseline, sigma,
                        batch_tile=8)
    jax.block_until_ready(out2)
    assert jnp.allclose(out2, ref2, atol=1e-6, rtol=1e-5)

    # 3) Channel-split path (co_t = ci_t = 128 lane-dense tiles, leading
    #    "parallel" axes -> megacore-ready on v7x).
    B3, C_in3, C_out3 = 8, 256, 256
    k7, k8, k9 = jax.random.split(jax.random.PRNGKey(2), 3)
    pre3 = (jax.random.uniform(k7, (B3, C_in3)) > 0.5).astype(jnp.float32)
    post3 = (jax.random.uniform(k8, (B3, C_out3)) > 0.5).astype(jnp.float32)
    dt3 = jax.random.normal(k9, (B3, C_out3, C_in3), dtype=jnp.float32)

    ref3 = ssdp_reference(pre3, post3, dt3, a_plus, a_minus, a_baseline, sigma)
    out3 = ssdp_forward(pre3, post3, dt3, a_plus, a_minus, a_baseline, sigma,
                        cout_blocks=2, cin_blocks=2)
    jax.block_until_ready(out3)
    assert jnp.allclose(out3, ref3, atol=1e-6, rtol=1e-5)

    print("KERNEL_OK")
</pallas_src>

<mosaic_0001>
module attributes {stable_mosaic.version = 11 : i64} {
  func.func @ssdp_kernel(%arg0: i32, %arg1: i32, %arg2: i32, %arg3: memref<3xf32, #tpu.memory_space<smem>>, %arg4: memref<8x32xf32, #tpu.memory_space<vmem>>, %arg5: memref<8x16xf32, #tpu.memory_space<vmem>>, %arg6: memref<8x16x32xf32, #tpu.memory_space<vmem>>, %arg7: memref<16x32xf32, #tpu.memory_space<vmem>>) attributes {dimension_semantics = [#tpu.dimension_semantics<parallel>, #tpu.dimension_semantics<parallel>, #tpu.dimension_semantics<arbitrary>], iteration_bounds = array<i64: 1, 1, 1>, scalar_prefetch = 1 : i64, scratch_operands = 0 : i64, tpu.core_type = #tpu.core_type<tc>, window_params = [{transform_indices = @transform_0, window_bounds = array<i64: 8, 32>}, {transform_indices = @transform_1, window_bounds = array<i64: 8, 16>}, {transform_indices = @transform_2, window_bounds = array<i64: 8, 16, 32>}, {transform_indices = @transform_3, window_bounds = array<i64: 16, 32>}]} {
    %c0 = arith.constant 0 : index
    %0 = memref.load %arg3[%c0] : memref<3xf32, #tpu.memory_space<smem>>
    %c1 = arith.constant 1 : index
    %1 = memref.load %arg3[%c1] : memref<3xf32, #tpu.memory_space<smem>>
    %c2 = arith.constant 2 : index
    %2 = memref.load %arg3[%c2] : memref<3xf32, #tpu.memory_space<smem>>
    %c0_i32 = arith.constant 0 : i32
    %3 = arith.cmpi eq, %arg2, %c0_i32 : i32
    %4 = arith.extui %3 : i1 to i32
    %c0_i32_0 = arith.constant 0 : i32
    %5 = arith.cmpi ne, %4, %c0_i32_0 : i32
    scf.if %5 {
      %cst_14 = arith.constant 0.000000e+00 : f32
      %28 = vector.broadcast %cst_14 : f32 to vector<16x32xf32>
      %c0_15 = arith.constant 0 : index
      %c0_16 = arith.constant 0 : index
      %29 = vector.load %arg7[%c0_15, %c0_16] : memref<16x32xf32, #tpu.memory_space<vmem>>, vector<16x32xf32>
      tpu.vector_store %arg7[%c0_15, %c0_16], %28 {strides = array<i32>} : memref<16x32xf32, #tpu.memory_space<vmem>>, vector<16x32xf32>,
    } else {
    }
    %c0_1 = arith.constant 0 : index
    %c0_2 = arith.constant 0 : index
    %6 = vector.load %arg4[%c0_1, %c0_2] : memref<8x32xf32, #tpu.memory_space<vmem>>, vector<8x32xf32>
    %c0_3 = arith.constant 0 : index
    %c0_4 = arith.constant 0 : index
    %7 = vector.load %arg5[%c0_3, %c0_4] : memref<8x16xf32, #tpu.memory_space<vmem>>, vector<8x16xf32>
    %c0_5 = arith.constant 0 : index
    %c0_6 = arith.constant 0 : index
    %c0_7 = arith.constant 0 : index
    %8 = vector.load %arg6[%c0_5, %c0_6, %c0_7] : memref<8x16x32xf32, #tpu.memory_space<vmem>>, vector<8x16x32xf32>
    %9 = arith.mulf %8, %8 : vector<8x16x32xf32>
    %10 = vector.broadcast %1 : f32 to vector<8x16x32xf32>
    %11 = arith.mulf %10, %9 : vector<8x16x32xf32>
    %12 = math.exp %11 : vector<8x16x32xf32>
    %13 = vector.shape_cast %7 : vector<8x16xf32> to vector<8x16x1xf32>
    %14 = vector.shape_cast %6 : vector<8x32xf32> to vector<8x1x32xf32>
    %15 = vector.broadcast %13 : vector<8x16x1xf32> to vector<8x16x32xf32>
    %16 = vector.broadcast %14 : vector<8x1x32xf32> to vector<8x16x32xf32>
    %17 = arith.mulf %15, %16 : vector<8x16x32xf32>
    %18 = vector.broadcast %0 : f32 to vector<8x16x32xf32>
    %19 = arith.subf %17, %18 : vector<8x16x32xf32>
    %20 = arith.mulf %12, %19 : vector<8x16x32xf32>
    %c0_8 = arith.constant 0 : index
    %c0_9 = arith.constant 0 : index
    %21 = vector.load %arg7[%c0_8, %c0_9] : memref<16x32xf32, #tpu.memory_space<vmem>>, vector<16x32xf32>
    %cst = arith.constant dense<0.000000e+00> : vector<16x32xf32>
    %22 = vector.multi_reduction <add>, %20, %cst [0] : vector<8x16x32xf32> to vector<16x32xf32>
    %23 = arith.addf %21, %22 : vector<16x32xf32>
    %c0_10 = arith.constant 0 : index
    %c0_11 = arith.constant 0 : index
    %24 = vector.load %arg7[%c0_10, %c0_11] : memref<16x32xf32, #tpu.memory_space<vmem>>, vector<16x32xf32>
    tpu.vector_store %arg7[%c0_10, %c0_11], %23 {strides = array<i32>} : memref<16x32xf32, #tpu.memory_space<vmem>>, vector<16x32xf32>,
    %c0_i32_12 = arith.constant 0 : i32
    %25 = arith.cmpi eq, %arg2, %c0_i32_12 : i32
    %26 = arith.extui %25 : i1 to i32
    %c0_i32_13 = arith.constant 0 : i32
    %27 = arith.cmpi ne, %26, %c0_i32_13 : i32
    scf.if %27 {
      %c0_14 = arith.constant 0 : index
      %c0_15 = arith.constant 0 : index
      %28 = vector.load %arg7[%c0_14, %c0_15] : memref<16x32xf32, #tpu.memory_space<vmem>>, vector<16x32xf32>
      %29 = vector.broadcast %2 : f32 to vector<16x32xf32>
      %30 = arith.mulf %28, %29 : vector<16x32xf32>
      %cst_16 = arith.constant -1.000000e+00 : f32
      %cst_17 = arith.constant 1.000000e+00 : f32
      %31 = vector.broadcast %cst_16 : f32 to vector<16x32xf32>
      %32 = arith.maximumf %31, %30 : vector<16x32xf32>
      %33 = vector.broadcast %cst_17 : f32 to vector<16x32xf32>
      %34 = arith.minimumf %33, %32 : vector<16x32xf32>
      %c0_18 = arith.constant 0 : index
      %c0_19 = arith.constant 0 : index
      %35 = vector.load %arg7[%c0_18, %c0_19] : memref<16x32xf32, #tpu.memory_space<vmem>>, vector<16x32xf32>
      tpu.vector_store %arg7[%c0_18, %c0_19], %34 {strides = array<i32>} : memref<16x32xf32, #tpu.memory_space<vmem>>, vector<16x32xf32>,
    } else {
    }
    return
  }
  func.func @transform_0(%arg0: i32, %arg1: i32, %arg2: i32, %arg3: memref<3xf32, #tpu.memory_space<smem>>) -> (i32, i32) {
    %c0_i32 = arith.constant 0 : i32
    return %arg2, %arg1 : i32, i32
  }
  func.func @transform_1(%arg0: i32, %arg1: i32, %arg2: i32, %arg3: memref<3xf32, #tpu.memory_space<smem>>) -> (i32, i32) {
    %c0_i32 = arith.constant 0 : i32
    return %arg2, %arg0 : i32, i32
  }
  func.func @transform_2(%arg0: i32, %arg1: i32, %arg2: i32, %arg3: memref<3xf32, #tpu.memory_space<smem>>) -> (i32, i32, i32) {
    %c0_i32 = arith.constant 0 : i32
    return %arg2, %arg0, %arg1 : i32, i32, i32
  }
  func.func @transform_3(%arg0: i32, %arg1: i32, %arg2: i32, %arg3: memref<3xf32, #tpu.memory_space<smem>>) -> (i32, i32) {
    %c0_i32 = arith.constant 0 : i32
    return %arg0, %arg1 : i32, i32
  }
}

</mosaic_0001>

<llo_original>
// kernel: tpu_custom_call.1
$region0: #{tpu_custom_call.1}
  #allocation0 [shape = 'u32[]', space=smem, size = 0x4, offset = 0x4, fixed_abs, tag = 'smem constant byte address 0x4 - core index']
  #allocation1 [shape = 'u32[144,128]{1,0:T(1,128)}', space=vmem, size = 0x12000, scoped, tag = 'internal scratch']
  #allocation2 [shape = 's32[1]{0}', space=sflag, size = 0x4, scoped, tag = 'scoped memory for tpu_custom_call.1']
  #allocation3 [shape = 'u8[512]{0}', space=smem, size = 0x200, scoped, tag = 'prefetched SMEM operand 0']
  %s0 = inlined_call_operand.hbm [shape: f32[3], index: 0, kind: input, shape index: {}]
  %s1 = inlined_call_operand.hbm [shape: f32[8,32], index: 1, kind: input, shape index: {}]
  %s2 = inlined_call_operand.hbm [shape: f32[8,16], index: 2, kind: input, shape index: {}]
  %s3 = inlined_call_operand.hbm [shape: f32[8,16,32], index: 3, kind: input, shape index: {}]
  %s4 = inlined_call_operand.hbm [shape: f32[16,32], index: 4, kind: output, shape index: {}]
  %s5 = sld [smem:[#allocation0]]
  $region42: #{tpu_custom_call.1} parent=0
    _
  %s7 = ssub.s32 1, %s5
  %s8 = scalar_select 0, %s7, %s5
  %10 = dma.hbm_to_smem %s0, 16, [#allocation3], [#allocation2]
  %11 = dma.done [#allocation2], 16
  %12 = sfence
  $region1: #{tpu_custom_call.1} parent=0
    #allocation4 [shape = 'u8[4096]{0}', space=vmem, size = 0x1000, scoped, tag = 'input window, operand 1, single buffered']
    #allocation5 [shape = 's32[1]{0}', space=sflag, size = 0x4, scoped, tag = 'scoped memory for tpu_custom_call.1']
    #allocation6 [shape = 's32[1]{0}', space=sflag, size = 0x4, scoped, tag = 'scoped memory for tpu_custom_call.1']
    #allocation7 [shape = 'u8[4096]{0}', space=vmem, size = 0x1000, scoped, tag = 'input window, operand 2, single buffered']
    #allocation8 [shape = 's32[1]{0}', space=sflag, size = 0x4, scoped, tag = 'scoped memory for tpu_custom_call.1']
    #allocation9 [shape = 'u8[65536]{0}', space=vmem, size = 0x10000, scoped, tag = 'input window, operand 3, single buffered']
    #allocation10 [shape = 'u8[8192]{0}', space=vmem, size = 0x2000, scoped, tag = 'output window, operand 0, single buffered']
    %13 = vsyncpa [#allocation5], 0
    %14 = vsyncpa [#allocation8], 0
    %15 = vsyncpa [#allocation6], 0
    // Predicated region
    $region2: #{tpu_custom_call.1} parent=1 // pred_check
      _
    $region3: #{tpu_custom_call.1} parent=1 // pred_check_branch
      %17 = sbr.rel (0) target = $region5
    $region4: #{tpu_custom_call.1} parent=1 // pred_region
      %s19 = ssub.s32 128, 128
      %20 = vsyncadd [#allocation5], %s19
      %s22 = sshll.u32 [#allocation4], 4
      %s23 = int_to_ptr.vmem [resolvable:$true] %s22
      %25 = dma.hbm_to_vmem [thread:$0]  %s1, 128, %s23, [#allocation5]
    $region5: #{tpu_custom_call.1} parent=1 // pred_fallthru
      _
    // Predicated region
    $region6: #{tpu_custom_call.1} parent=1 // pred_check
      _
    $region7: #{tpu_custom_call.1} parent=1 // pred_check_branch
      %27 = sbr.rel (0) target = $region9
    $region8: #{tpu_custom_call.1} parent=1 // pred_region
      %s29 = ssub.s32 128, 128
      %30 = vsyncadd [#allocation8], %s29
      %s32 = sshll.u32 [#allocation7], 4
      %s33 = int_to_ptr.vmem [resolvable:$true] %s32
      %35 = dma.hbm_to_vmem [thread:$0]  %s2, 128, %s33, [#allocation8]
    $region9: #{tpu_custom_call.1} parent=1 // pred_fallthru
      _
    // Predicated region
    $region10: #{tpu_custom_call.1} parent=1 // pred_check
      _
    $region11: #{tpu_custom_call.1} parent=1 // pred_check_branch
      %37 = sbr.rel (0) target = $region13
    $region12: #{tpu_custom_call.1} parent=1 // pred_region
      %s39 = ssub.s32 2048, 2048
      %40 = vsyncadd [#allocation8], %s39
      %s41 = sshll.u32 [#allocation9], 4
      %s42 = int_to_ptr.vmem [resolvable:$true] %s41
      %47 = dma.hbm_to_vmem [thread:$0]  %s3, 2048, %s42, [#allocation8], 128, 128, 8
    $region13: #{tpu_custom_call.1} parent=1 // pred_fallthru
      _
    // Predicated region
    $region14: #{tpu_custom_call.1} parent=1 // pred_check
      _
    $region15: #{tpu_custom_call.1} parent=1 // pred_check_branch
      %49 = sbr.rel (0) target = $region17
    $region16: #{tpu_custom_call.1} parent=1 // pred_region
      %50 = dma.done [#allocation5], 128
    $region17: #{tpu_custom_call.1} parent=1 // pred_fallthru
      _
    // Predicated region
    $region18: #{tpu_custom_call.1} parent=1 // pred_check
      _
    $region19: #{tpu_custom_call.1} parent=1 // pred_check_branch
      %52 = sbr.rel (0) target = $region21
    $region20: #{tpu_custom_call.1} parent=1 // pred_region
      %53 = dma.done [#allocation8], 128
    $region21: #{tpu_custom_call.1} parent=1 // pred_fallthru
      _
    // Predicated region
    $region22: #{tpu_custom_call.1} parent=1 // pred_check
      _
    $region23: #{tpu_custom_call.1} parent=1 // pred_check_branch
      %55 = sbr.rel (0) target = $region25
    $region24: #{tpu_custom_call.1} parent=1 // pred_region
      %56 = dma.done [#allocation8], 2048
    $region25: #{tpu_custom_call.1} parent=1 // pred_fallthru
      _
    %s57 = sld [smem:[#allocation3]]
    %s58 = sld [smem:[#allocation3 + $0x1]]
    %s59 = sld [smem:[#allocation3 + $0x2]]
    %p60 = scmp.eq.s32.totalorder 0, 0
    // Predicated region
    $region26: #{tpu_custom_call.1} parent=1 // pred_check
      %p61 = pneg %p60
    $region27: #{tpu_custom_call.1} parent=1 // pred_check_branch
      %63 = sbr.rel (%p61) target = $region29
    $region28: #{tpu_custom_call.1} parent=1 // pred_region
      %vm64 = vcmask 261120
      %65 = vst.msk [vmem:[#allocation10] sm:$0xff] %vm64, 0.0
      %66 = vst.msk [vmem:[#allocation10 + $0x8] sm:$0xff] %vm64, 0.0
    $region29: #{tpu_custom_call.1} parent=1 // pred_fallthru
      _
    %v67 = vld [vmem:[#allocation4] sm:$0xff]
    %v68 = vld [vmem:[#allocation7] sm:$0xff]
    %v69 = vld [vmem:[#allocation9] sm:$0xff]
    %v70 = vld [vmem:[#allocation9 + $0x8] sm:$0xff]
    %v71 = vld [vmem:[#allocation9 + $0x10] sm:$0xff]
    %v72 = vld [vmem:[#allocation9 + $0x18] sm:$0xff]
    %v73 = vld [vmem:[#allocation9 + $0x20] sm:$0xff]
    %v74 = vld [vmem:[#allocation9 + $0x28] sm:$0xff]
    %v75 = vld [vmem:[#allocation9 + $0x30] sm:$0xff]
    %v76 = vld [vmem:[#allocation9 + $0x38] sm:$0xff]
    %v77 = vld [vmem:[#allocation9 + $0x40] sm:$0xff]
    %v78 = vld [vmem:[#allocation9 + $0x48] sm:$0xff]
    %v79 = vld [vmem:[#allocation9 + $0x50] sm:$0xff]
    %v80 = vld [vmem:[#allocation9 + $0x58] sm:$0xff]
    %v81 = vld [vmem:[#allocation9 + $0x60] sm:$0xff]
    %v82 = vld [vmem:[#allocation9 + $0x68] sm:$0xff]
    %v83 = vld [vmem:[#allocation9 + $0x70] sm:$0xff]
    %v84 = vld [vmem:[#allocation9 + $0x78] sm:$0xff]
    %v85 = vmul.f32 %v69, %v69
    %v86 = vmul.f32 %v70, %v70
    %v87 = vmul.f32 %v71, %v71
    %v88 = vmul.f32 %v72, %v72
    %v89 = vmul.f32 %v73, %v73
    %v90 = vmul.f32 %v74, %v74
    %v91 = vmul.f32 %v75, %v75
    %v92 = vmul.f32 %v76, %v76
    %v93 = vmul.f32 %v77, %v77
    %v94 = vmul.f32 %v78, %v78
    %v95 = vmul.f32 %v79, %v79
    %v96 = vmul.f32 %v80, %v80
    %v97 = vmul.f32 %v81, %v81
    %v98 = vmul.f32 %v82, %v82
    %v99 = vmul.f32 %v83, %v83
    %v100 = vmul.f32 %v84, %v84
    %v101 = vstv %s58
    %v102 = vmul.f32 %v101, %v85
    %v103 = vmul.f32 %v101, %v86
    %v104 = vmul.f32 %v101, %v87
    %v105 = vmul.f32 %v101, %v88
    %v106 = vmul.f32 %v101, %v89
    %v107 = vmul.f32 %v101, %v90
    %v108 = vmul.f32 %v101, %v91
    %v109 = vmul.f32 %v101, %v92
    %v110 = vmul.f32 %v101, %v93
    %v111 = vmul.f32 %v101, %v94
    %v112 = vmul.f32 %v101, %v95
    %v113 = vmul.f32 %v101, %v96
    %v114 = vmul.f32 %v101, %v97
    %v115 = vmul.f32 %v101, %v98
    %v116 = vmul.f32 %v101, %v99
    %v117 = vmul.f32 %v101, %v100
    %v118 = vmul.f32 %v102, 1.442695
    %v119 = vpow.pop %v118
    %v120 = vmul.f32 %v103, 1.442695
    %v121 = vpow.pop %v120
    %v122 = vmul.f32 %v104, 1.442695
    %v123 = vpow.pop %v122
    %v124 = vmul.f32 %v105, 1.442695
    %v125 = vpow.pop %v124
    %v126 = vmul.f32 %v106, 1.442695
    %v127 = vpow.pop %v126
    %v128 = vmul.f32 %v107, 1.442695
    %v129 = vpow.pop %v128
    %v130 = vmul.f32 %v108, 1.442695
    %v131 = vpow.pop %v130
    %v132 = vmul.f32 %v109, 1.442695
    %v133 = vpow.pop %v132
    %v134 = vmul.f32 %v110, 1.442695
    %v135 = vpow.pop %v134
    %v136 = vmul.f32 %v111, 1.442695
    %v137 = vpow.pop %v136
    %v138 = vmul.f32 %v112, 1.442695
    %v139 = vpow.pop %v138
    %v140 = vmul.f32 %v113, 1.442695
    %v141 = vpow.pop %v140
    %v142 = vmul.f32 %v114, 1.442695
    %v143 = vpow.pop %v142
    %v144 = vmul.f32 %v115, 1.442695
    %v145 = vpow.pop %v144
    %v146 = vmul.f32 %v116, 1.442695
    %v147 = vpow.pop %v146
    %v148 = vmul.f32 %v117, 1.442695
    %v149 = vpow.pop %v148
    %v150 = vlaneseq
    %v151 = vshrl.u32 %v150, 7
    %v152 = vsub.s32 0, %v151
    %v153 = vrot.slane %v68, %v152
    %155 = vbcast.lane.b32.xlu0 %v153, 256
    %v156 = vpop.permute.xlu0 %155
    %s158 = sor.u32 256, 8
    %159 = vbcast.lane.b32.xlu0 %v153, %s158
    %v160 = vpop.permute.xlu0 %159
    %v161 = vlaneseq
    %v162 = vshrl.u32 %v161, 7
    %v163 = vsub.s32 1, %v162
    %v164 = vrot.slane %v68, %v163
    %166 = vbcast.lane.b32.xlu0 %v164, 256
    %v167 = vpop.permute.xlu0 %166
    %s169 = sor.u32 256, 8
    %170 = vbcast.lane.b32.xlu0 %v164, %s169
    %v171 = vpop.permute.xlu0 %170
    %v172 = vlaneseq
    %v173 = vshrl.u32 %v172, 7
    %v174 = vsub.s32 2, %v173
    %v175 = vrot.slane %v68, %v174
    %177 = vbcast.lane.b32.xlu0 %v175, 256
    %v178 = vpop.permute.xlu0 %177
    %s180 = sor.u32 256, 8
    %181 = vbcast.lane.b32.xlu0 %v175, %s180
    %v182 = vpop.permute.xlu0 %181
    %v183 = vlaneseq
    %v184 = vshrl.u32 %v183, 7
    %v185 = vsub.s32 3, %v184
    %v186 = vrot.slane %v68, %v185
    %188 = vbcast.lane.b32.xlu0 %v186, 256
    %v189 = vpop.permute.xlu0 %188
    %s191 = sor.u32 256, 8
    %192 = vbcast.lane.b32.xlu0 %v186, %s191
    %v193 = vpop.permute.xlu0 %192
    %v194 = vlaneseq
    %v195 = vshrl.u32 %v194, 7
    %v196 = vsub.s32 4, %v195
    %v197 = vrot.slane %v68, %v196
    %199 = vbcast.lane.b32.xlu0 %v197, 256
    %v200 = vpop.permute.xlu0 %199
    %s202 = sor.u32 256, 8
    %203 = vbcast.lane.b32.xlu0 %v197, %s202
    %v204 = vpop.permute.xlu0 %203
    %v205 = vlaneseq
    %v206 = vshrl.u32 %v205, 7
    %v207 = vsub.s32 5, %v206
    %v208 = vrot.slane %v68, %v207
    %210 = vbcast.lane.b32.xlu0 %v208, 256
    %v211 = vpop.permute.xlu0 %210
    %s213 = sor.u32 256, 8
    %214 = vbcast.lane.b32.xlu0 %v208, %s213
    %v215 = vpop.permute.xlu0 %214
    %v216 = vlaneseq
    %v217 = vshrl.u32 %v216, 7
    %v218 = vsub.s32 6, %v217
    %v219 = vrot.slane %v68, %v218
    %221 = vbcast.lane.b32.xlu0 %v219, 256
    %v222 = vpop.permute.xlu0 %221
    %s224 = sor.u32 256, 8
    %225 = vbcast.lane.b32.xlu0 %v219, %s224
    %v226 = vpop.permute.xlu0 %225
    %v227 = vlaneseq
    %v228 = vshrl.u32 %v227, 7
    %v229 = vsub.s32 7, %v228
    %v230 = vrot.slane %v68, %v229
    %232 = vbcast.lane.b32.xlu0 %v230, 256
    %v233 = vpop.permute.xlu0 %232
    %s235 = sor.u32 256, 8
    %236 = vbcast.lane.b32.xlu0 %v230, %s235
    %v237 = vpop.permute.xlu0 %236
    %v239 = vcombine.high %v67, %v67
    %v241 = vunpack.c.l.s4 1966171168
    %v242 = vunpack.c.0.s8 %v241
    %v243 = vlaneseq
    %v244 = vshrl.u32 %v243, 7
    %v245 = vsub.s32 %v242, %v244
    %v246 = vrot.slane %v67, %v245
    %v248 = vunpack.c.l.s4 1966171168
    %v249 = vunpack.c.0.s8 %v248
    %v250 = vlaneseq
    %v251 = vshrl.u32 %v250, 7
    %v252 = vsub.s32 %v249, %v251
    %v253 = vrot.slane %v239, %v252
    %v254 = vcombine.high %v246, %v246
    %v255 = vcombine.high %v253, %v253
    %v257 = vunpack.c.l.s4 1966171168
    %v258 = vunpack.c.0.s8 %v257
    %v259 = vlaneseq
    %v260 = vshrl.u32 %v259, 7
    %v261 = vsub.s32 %v258, %v260
    %v262 = vrot.slane %v246, %v261
    %v264 = vunpack.c.l.s4 1966171168
    %v265 = vunpack.c.0.s8 %v264
    %v266 = vlaneseq
    %v267 = vshrl.u32 %v266, 7
    %v268 = vsub.s32 %v265, %v267
    %v269 = vrot.slane %v253, %v268
    %v271 = vunpack.c.l.s4 1966171168
    %v272 = vunpack.c.0.s8 %v271
    %v273 = vlaneseq
    %v274 = vshrl.u32 %v273, 7
    %v275 = vsub.s32 %v272, %v274
    %v276 = vrot.slane %v254, %v275
    %v278 = vunpack.c.l.s4 1966171168
    %v279 = vunpack.c.0.s8 %v278
    %v280 = vlaneseq
    %v281 = vshrl.u32 %v280, 7
    %v282 = vsub.s32 %v279, %v281
    %v283 = vrot.slane %v255, %v282
    %v284 = vcombine.high %v262, %v262
    %v285 = vcombine.high %v269, %v269
    %v286 = vcombine.high %v276, %v276
    %v287 = vcombine.high %v283, %v283
    %v288 = vlaneseq
    %v289 = vshrl.u32 %v288, 7
    %v290 = vsub.s32 0, %v289
    %v291 = vrot.slane %v262, %v290
    %v292 = vlaneseq
    %v293 = vshrl.u32 %v292, 7
    %v294 = vsub.s32 0, %v293
    %v295 = vrot.slane %v276, %v294
    %v296 = vlaneseq
    %v297 = vshrl.u32 %v296, 7
    %v298 = vsub.s32 0, %v297
    %v299 = vrot.slane %v284, %v298
    %v300 = vlaneseq
    %v301 = vshrl.u32 %v300, 7
    %v302 = vsub.s32 0, %v301
    %v303 = vrot.slane %v286, %v302
    %v304 = vlaneseq
    %v305 = vshrl.u32 %v304, 7
    %v306 = vsub.s32 0, %v305
    %v307 = vrot.slane %v269, %v306
    %v308 = vlaneseq
    %v309 = vshrl.u32 %v308, 7
    %v310 = vsub.s32 0, %v309
    %v311 = vrot.slane %v283, %v310
    %v312 = vlaneseq
    %v313 = vshrl.u32 %v312, 7
    %v314 = vsub.s32 0, %v313
    %v315 = vrot.slane %v285, %v314
    %v316 = vlaneseq
    %v317 = vshrl.u32 %v316, 7
    %v318 = vsub.s32 0, %v317
    %v319 = vrot.slane %v287, %v318
    %v328 = vmul.f32 %v156, %v291
    %v329 = vmul.f32 %v160, %v291
    %v330 = vmul.f32 %v167, %v295
    %v331 = vmul.f32 %v171, %v295
    %v332 = vmul.f32 %v178, %v299
    %v333 = vmul.f32 %v182, %v299
    %v334 = vmul.f32 %v189, %v303
    %v335 = vmul.f32 %v193, %v303
    %v336 = vmul.f32 %v200, %v307
    %v337 = vmul.f32 %v204, %v307
    %v338 = vmul.f32 %v211, %v311
    %v339 = vmul.f32 %v215, %v311
    %v340 = vmul.f32 %v222, %v315
    %v341 = vmul.f32 %v226, %v315
    %v342 = vmul.f32 %v233, %v319
    %v343 = vmul.f32 %v237, %v319
    %v344 = vstv %s57
    %v345 = vsub.f32 %v328, %v344
    %v346 = vsub.f32 %v329, %v344
    %v347 = vsub.f32 %v330, %v344
    %v348 = vsub.f32 %v331, %v344
    %v349 = vsub.f32 %v332, %v344
    %v350 = vsub.f32 %v333, %v344
    %v351 = vsub.f32 %v334, %v344
    %v352 = vsub.f32 %v335, %v344
    %v353 = vsub.f32 %v336, %v344
    %v354 = vsub.f32 %v337, %v344
    %v355 = vsub.f32 %v338, %v344
    %v356 = vsub.f32 %v339, %v344
    %v357 = vsub.f32 %v340, %v344
    %v358 = vsub.f32 %v341, %v344
    %v359 = vsub.f32 %v342, %v344
    %v360 = vsub.f32 %v343, %v344
    %v361 = vmul.f32 %v119, %v345
    %v362 = vmul.f32 %v121, %v346
    %v363 = vmul.f32 %v123, %v347
    %v364 = vmul.f32 %v125, %v348
    %v365 = vmul.f32 %v127, %v349
    %v366 = vmul.f32 %v129, %v350
    %v367 = vmul.f32 %v131, %v351
    %v368 = vmul.f32 %v133, %v352
    %v369 = vmul.f32 %v135, %v353
    %v370 = vmul.f32 %v137, %v354
    %v371 = vmul.f32 %v139, %v355
    %v372 = vmul.f32 %v141, %v356
    %v373 = vmul.f32 %v143, %v357
    %v374 = vmul.f32 %v145, %v358
    %v375 = vmul.f32 %v147, %v359
    %v376 = vmul.f32 %v149, %v360
    %v377 = vld [vmem:[#allocation10] sm:$0xff]
    %v378 = vld [vmem:[#allocation10 + $0x8] sm:$0xff]
    %vm379 = vcmask 261120
    %v380 = vsel %vm379, %v361, 0.0
    %v381 = vsel %vm379, %v363, 0.0
    %v382 = vadd.f32 %v380, %v381
    %v383 = vsel %vm379, %v365, 0.0
    %v384 = vadd.f32 %v382, %v383
    %v385 = vsel %vm379, %v367, 0.0
    %v386 = vadd.f32 %v384, %v385
    %v387 = vsel %vm379, %v369, 0.0
    %v388 = vadd.f32 %v386, %v387
    %v389 = vsel %vm379, %v371, 0.0
    %v390 = vadd.f32 %v388, %v389
    %v391 = vsel %vm379, %v373, 0.0
    %v392 = vadd.f32 %v390, %v391
    %v393 = vsel %vm379, %v375, 0.0
    %v394 = vadd.f32 %v392, %v393
    %v395 = vsel %vm379, %v362, 0.0
    %v396 = vsel %vm379, %v364, 0.0
    %v397 = vadd.f32 %v395, %v396
    %v398 = vsel %vm379, %v366, 0.0
    %v399 = vadd.f32 %v397, %v398
    %v400 = vsel %vm379, %v368, 0.0
    %v401 = vadd.f32 %v399, %v400
    %v402 = vsel %vm379, %v370, 0.0
    %v403 = vadd.f32 %v401, %v402
    %v404 = vsel %vm379, %v372, 0.0
    %v405 = vadd.f32 %v403, %v404
    %v406 = vsel %vm379, %v374, 0.0
    %v407 = vadd.f32 %v405, %v406
    %v408 = vsel %vm379, %v376, 0.0
    %v409 = vadd.f32 %v407, %v408
    %v410 = vadd.f32 %v377, %v394
    %v411 = vadd.f32 %v378, %v409
    %412 = vst.msk [vmem:[#allocation10] sm:$0xff] %vm379, %v410
    %413 = vst.msk [vmem:[#allocation10 + $0x8] sm:$0xff] %vm379, %v411
    // Predicated region
    $region30: #{tpu_custom_call.1} parent=1 // pred_check
      %p414 = pneg %p60
    $region31: #{tpu_custom_call.1} parent=1 // pred_check_branch
      %416 = sbr.rel (%p414) target = $region33
    $region32: #{tpu_custom_call.1} parent=1 // pred_region
      %v417 = vld [vmem:[#allocation10] sm:$0xff]
      %v418 = vld [vmem:[#allocation10 + $0x8] sm:$0xff]
      %v419 = vstv %s59
      %v420 = vmul.f32 %v417, %v419
      %v421 = vmul.f32 %v418, %v419
      %v422 = vmax.f32 %v420, -1.0
      %v423 = vmax.f32 %v421, -1.0
      %v424 = vmin.f32 %v422, 1.0
      %v425 = vmin.f32 %v423, 1.0
      %426 = vst.msk [vmem:[#allocation10] sm:$0xff] %vm379, %v424
      %427 = vst.msk [vmem:[#allocation10 + $0x8] sm:$0xff] %vm379, %v425
    $region33: #{tpu_custom_call.1} parent=1 // pred_fallthru
      _
    // Predicated region
    $region34: #{tpu_custom_call.1} parent=1 // pred_check
      _
    $region35: #{tpu_custom_call.1} parent=1 // pred_check_branch
      %429 = sbr.rel (0) target = $region37
    $region36: #{tpu_custom_call.1} parent=1 // pred_region
      %s431 = ssub.s32 256, 256
      %432 = vsyncadd [#allocation6], %s431
      %s433 = sshll.u32 [#allocation10], 4
      %s434 = int_to_ptr.vmem [resolvable:$true] %s433
      %439 = dma.vmem_to_hbm [thread:$0]  %s434, 256, %s4, [#allocation6], 128, 128, 8
    $region37: #{tpu_custom_call.1} parent=1 // pred_fallthru
      _
    // Predicated region
    $region38: #{tpu_custom_call.1} parent=1 // pred_check
      _
    $region39: #{tpu_custom_call.1} parent=1 // pred_check_branch
      %441 = sbr.rel (0) target = $region41
    $region40: #{tpu_custom_call.1} parent=1 // pred_region
      %442 = dma.done [#allocation6], 256
    $region41: #{tpu_custom_call.1} parent=1 // pred_fallthru
      _
    %443 = vsyncpa [#allocation5], 1
    %444 = vsyncpa [#allocation8], 1
    %445 = vsyncpa [#allocation6], 1

</llo_original>
